<compile_context>
chip_gen: v5e
topology: v5e:2x2
jax: 0.10.0
libtpu: 0.0.40
codegen_flags: <defaults>
</compile_context>

<pallas_src>
import jax
import jax.numpy as jnp
from jax.experimental import pallas as pl
from jax.experimental.pallas import tpu as pltpu


def _glove_loss_kernel(c_ref, t_ref, cols_ref, out_ref):
    # (TB, E_pad) slabs; upcast (no-op for f32 slabs) and accumulate in f32.
    c = c_ref[...].astype(jnp.float32)
    t = t_ref[...].astype(jnp.float32)
    # Row-wise dot product == bmm((TB,1,E), (TB,E,1)).squeeze(2)
    inner = jnp.sum(c * t, axis=1, keepdims=True)            # (TB, 1)
    cols = cols_ref[...]                                      # (TB, 2) f32
    delta = cols[:, 0:1]                                      # cb + tb - co
    weight = cols[:, 1:2]
    diff = inner + delta                                      # (TB, 1)
    partial = jnp.sum(weight * diff * diff,
                      axis=(0, 1), keepdims=True)             # (1, 1)
    # Lane-dense full-block write of the per-tile partial (read back at [0,0]).
    out_ref[...] = jnp.broadcast_to(partial[None], out_ref.shape)


def _round_up(x, m):
    return ((x + m - 1) // m) * m


_TILE_B_CAP = 2048  # per-step slab DMA ~2 MiB f32 / ~1 MiB bf16 at E=128


def glove_loss(emb_v, emb_u, v_bias, u_bias,
               center_words, target_words, coocs, weighting,
               *, tile_b=None, slab_dtype=jnp.float32):
    """Pallas equivalent of GloVe.forward. Returns a scalar float32 loss.

    slab_dtype: dtype of the gathered (B, E) embedding slabs streamed to the
      kernel.  jnp.bfloat16 halves HBM traffic on this bandwidth-bound op
      (accumulation stays f32); jnp.float32 matches PyTorch numerics exactly.
    """
    V, E = emb_v.shape
    B = center_words.shape[0]

    # Lane-dense embedding axis: zero-pad E to a multiple of 128.
    E_pad = _round_up(E, 128)
    if E_pad != E:
        emb_v = jnp.pad(emb_v, ((0, 0), (0, E_pad - E)))
        emb_u = jnp.pad(emb_u, ((0, 0), (0, E_pad - E)))

    # Batch tile size: multiple of 8 (sublane-dense).  Big tiles amortize the
    # per-grid-step overhead; keep >= 2 tiles when possible so the parallel
    # grid axis can split across v7x's two TensorCores.
    if tile_b is None:
        if B <= 8:
            tile_b = 8
        else:
            tile_b = min(_TILE_B_CAP, _round_up((B + 1) // 2, 8))
    tile_b = max(8, _round_up(int(tile_b), 8))
    b_pad = _round_up(B, tile_b)
    num_tiles = b_pad // tile_b

    center_ids = center_words.reshape(B).astype(jnp.int32)
    target_ids = target_words.reshape(B).astype(jnp.int32)
    co = coocs.reshape(B).astype(jnp.float32)
    wt = weighting.reshape(B).astype(jnp.float32)

    # Pad ids / tiny per-row arrays BEFORE the gather so the gathered slabs
    # come out already padded (no extra pass over (B, E) data).  Padded rows
    # have weight == 0, so they contribute exactly 0 to the loss.
    if b_pad != B:
        pad = b_pad - B
        center_ids = jnp.pad(center_ids, (0, pad))   # id 0 is a valid row
        target_ids = jnp.pad(target_ids, (0, pad))
        co = jnp.pad(co, (0, pad))
        wt = jnp.pad(wt, (0, pad))

    # Wrapper-side gathers: dense per-batch operands for the kernel.
    c = emb_v[center_ids].astype(slab_dtype)                  # (b_pad, E_pad)
    t = emb_u[target_ids].astype(slab_dtype)                  # (b_pad, E_pad)
    # Collapse the four per-row scalars into one operand: [cb+tb-co, weight].
    delta = (v_bias[center_ids, 0].astype(jnp.float32)
             + u_bias[target_ids, 0].astype(jnp.float32) - co)
    cols = jnp.stack([delta, wt], axis=1)                     # (b_pad, 2) f32

    row_spec = pl.BlockSpec((tile_b, E_pad), lambda i: (i, 0))
    col_spec = pl.BlockSpec((tile_b, 2), lambda i: (i, 0))

    # VMEM budget: double-buffered inputs + tiny output block + headroom.
    slab_bytes = jnp.dtype(slab_dtype).itemsize
    vmem_est = 2 * (2 * tile_b * E_pad * slab_bytes      # c + t slabs
                    + tile_b * 128 * 4                   # cols (lane-padded)
                    + 8 * 128 * 4)                       # out block
    vmem_limit = int(min(max(vmem_est + (8 << 20), 32 << 20), 48 << 20))

    partials = pl.pallas_call(
        _glove_loss_kernel,
        out_shape=jax.ShapeDtypeStruct((num_tiles, 8, 128), jnp.float32),
        grid_spec=pltpu.PrefetchScalarGridSpec(
            num_scalar_prefetch=0,
            grid=(num_tiles,),
            in_specs=[row_spec, row_spec, col_spec],
            out_specs=pl.BlockSpec((1, 8, 128), lambda i: (i, 0, 0)),
        ),
        compiler_params=pltpu.CompilerParams(
            dimension_semantics=("parallel",),
            vmem_limit_bytes=vmem_limit),
    )(c, t, cols)

    # Tree-reduce the per-tile partial sums in the wrapper.
    return jnp.sum(partials[:, 0, 0])


def glove_loss_ref(emb_v, emb_u, v_bias, u_bias,
                   center_words, target_words, coocs, weighting):
    """Pure-JAX reference matching the PyTorch forward exactly."""
    ci = center_words[:, 0]
    ti = target_words[:, 0]
    inner = jnp.sum(emb_v[ci] * emb_u[ti], axis=1)              # (B,)
    loss = weighting[:, 0] * jnp.square(
        inner + v_bias[ci, 0] + u_bias[ti, 0] - coocs[:, 0])
    return jnp.sum(loss)


if __name__ == "__main__":
    key = jax.random.PRNGKey(0)

    # Two embedding configs: lane-dense E and a non-multiple-of-128 E
    # (exercises the E-padding path, as in common GloVe dims 50/100/200/300).
    for V, E in ((64, 128), (50, 96)):
        kp = jax.random.fold_in(key, V * 1000 + E)
        k1, k2, k3, k4 = jax.random.split(kp, 4)
        # deterministic parameter init (nn.Embedding default: N(0, 1))
        emb_v = jax.random.normal(k1, (V, E), jnp.float32)
        emb_u = jax.random.normal(k2, (V, E), jnp.float32)
        v_bias = jax.random.normal(k3, (V, 1), jnp.float32)
        u_bias = jax.random.normal(k4, (V, 1), jnp.float32)

        # (B, tile_b, slab_dtype, rtol): auto tile, explicit multi-tile with
        # batch padding, and the bf16-slab bandwidth path (looser tolerance).
        cases = ((8, None, jnp.float32, 1e-5),
                 (40, 16, jnp.float32, 1e-5),
                 (40, None, jnp.bfloat16, 3e-2))
        for B, tile_b, slab_dtype, rtol in cases:
            kb = jax.random.fold_in(kp, B + (0 if tile_b is None else tile_b))
            k5, k6, k7, k8 = jax.random.split(kb, 4)
            center_words = jax.random.randint(k5, (B, 1), 0, V, jnp.int32)
            target_words = jax.random.randint(k6, (B, 1), 0, V, jnp.int32)
            coocs = jax.random.uniform(k7, (B, 1), jnp.float32, 1.0, 10.0)
            weighting = jax.random.uniform(k8, (B, 1), jnp.float32, 0.0, 1.0)

            out = glove_loss(emb_v, emb_u, v_bias, u_bias,
                             center_words, target_words, coocs, weighting,
                             tile_b=tile_b, slab_dtype=slab_dtype)
            out = jax.block_until_ready(out)

            ref = glove_loss_ref(emb_v, emb_u, v_bias, u_bias,
                                 center_words, target_words, coocs, weighting)
            assert jnp.allclose(out, ref, rtol=rtol, atol=1e-3), (
                V, E, B, slab_dtype, out, ref)

    print("KERNEL_OK")
</pallas_src>

<mosaic_0001>
module attributes {stable_mosaic.version = 11 : i64} {
  func.func @_glove_loss_kernel(%arg0: i32, %arg1: memref<8x128xf32, #tpu.memory_space<vmem>>, %arg2: memref<8x128xf32, #tpu.memory_space<vmem>>, %arg3: memref<8x2xf32, #tpu.memory_space<vmem>>, %arg4: memref<1x8x128xf32, #tpu.memory_space<vmem>>) attributes {dimension_semantics = [#tpu.dimension_semantics<parallel>], iteration_bounds = array<i64: 1>, scalar_prefetch = 0 : i64, scratch_operands = 0 : i64, tpu.core_type = #tpu.core_type<tc>, window_params = [{transform_indices = @transform_0, window_bounds = array<i64: 8, 128>}, {transform_indices = @transform_1, window_bounds = array<i64: 8, 128>}, {transform_indices = @transform_2, window_bounds = array<i64: 8, 2>}, {transform_indices = @transform_3, window_bounds = array<i64: 1, 8, 128>}]} {
    %c0 = arith.constant 0 : index
    %c0_0 = arith.constant 0 : index
    %0 = vector.load %arg1[%c0, %c0_0] : memref<8x128xf32, #tpu.memory_space<vmem>>, vector<8x128xf32>
    %c0_1 = arith.constant 0 : index
    %c0_2 = arith.constant 0 : index
    %1 = vector.load %arg2[%c0_1, %c0_2] : memref<8x128xf32, #tpu.memory_space<vmem>>, vector<8x128xf32>
    %2 = arith.mulf %0, %1 : vector<8x128xf32>
    %cst = arith.constant dense<0.000000e+00> : vector<8xf32>
    %3 = vector.multi_reduction <add>, %2, %cst [1] : vector<8x128xf32> to vector<8xf32>
    %4 = vector.shape_cast %3 : vector<8xf32> to vector<8x1xf32>
    %c0_3 = arith.constant 0 : index
    %c0_4 = arith.constant 0 : index
    %5 = vector.load %arg3[%c0_3, %c0_4] : memref<8x2xf32, #tpu.memory_space<vmem>>, vector<8x2xf32>
    %6 = vector.extract_strided_slice %5 {offsets = [0, 0], sizes = [8, 1], strides = [1, 1]} : vector<8x2xf32> to vector<8x1xf32>
    %7 = vector.extract_strided_slice %5 {offsets = [0, 1], sizes = [8, 1], strides = [1, 1]} : vector<8x2xf32> to vector<8x1xf32>
    %8 = arith.addf %4, %6 : vector<8x1xf32>
    %9 = arith.mulf %7, %8 : vector<8x1xf32>
    %10 = arith.mulf %9, %8 : vector<8x1xf32>
    %11 = vector.shape_cast %10 : vector<8x1xf32> to vector<1x8x1xf32>
    %cst_5 = arith.constant dense<0.000000e+00> : vector<1xf32>
    %12 = vector.multi_reduction <add>, %11, %cst_5 [1, 2] : vector<1x8x1xf32> to vector<1xf32>
    %13 = vector.shape_cast %12 : vector<1xf32> to vector<1x1x1xf32>
    %14 = vector.extract %13[0, 0, 0] : f32 from vector<1x1x1xf32>
    %15 = vector.broadcast %14 : f32 to vector<1x1xf32>
    %16 = vector.shape_cast %15 : vector<1x1xf32> to vector<1x1x1xf32>
    %17 = vector.shape_cast %16 : vector<1x1x1xf32> to vector<1x1x1xf32>
    %18 = vector.broadcast %17 : vector<1x1x1xf32> to vector<1x8x128xf32>
    %c0_6 = arith.constant 0 : index
    %c0_7 = arith.constant 0 : index
    %c0_8 = arith.constant 0 : index
    %19 = vector.load %arg4[%c0_6, %c0_7, %c0_8] : memref<1x8x128xf32, #tpu.memory_space<vmem>>, vector<1x8x128xf32>
    tpu.vector_store %arg4[%c0_6, %c0_7, %c0_8], %18 {strides = array<i32>} : memref<1x8x128xf32, #tpu.memory_space<vmem>>, vector<1x8x128xf32>,
    return
  }
  func.func @transform_0(%arg0: i32) -> (i32, i32) {
    %c0_i32 = arith.constant 0 : i32
    %c0_i32_0 = arith.constant 0 : i32
    return %arg0, %c0_i32 : i32, i32
  }
  func.func @transform_1(%arg0: i32) -> (i32, i32) {
    %c0_i32 = arith.constant 0 : i32
    %c0_i32_0 = arith.constant 0 : i32
    return %arg0, %c0_i32 : i32, i32
  }
  func.func @transform_2(%arg0: i32) -> (i32, i32) {
    %c0_i32 = arith.constant 0 : i32
    %c0_i32_0 = arith.constant 0 : i32
    return %arg0, %c0_i32 : i32, i32
  }
  func.func @transform_3(%arg0: i32) -> (i32, i32, i32) {
    %c0_i32 = arith.constant 0 : i32
    %c0_i32_0 = arith.constant 0 : i32
    %c0_i32_1 = arith.constant 0 : i32
    return %arg0, %c0_i32, %c0_i32_0 : i32, i32, i32
  }
}

</mosaic_0001>

<llo_original>
// kernel: tpu_custom_call.1
$region0: #{tpu_custom_call.1}
  #allocation0 [shape = 'u32[]', space=smem, size = 0x4, offset = 0x4, fixed_abs, tag = 'smem constant byte address 0x4 - core index']
  #allocation1 [shape = 'u32[72,128]{1,0:T(1,128)}', space=vmem, size = 0x9000, scoped, tag = 'internal scratch']
  %s0 = inlined_call_operand.vmem [shape: f32[8,128], index: 0, kind: input, shape index: {}]
  %s1 = inlined_call_operand.hbm [shape: f32[8,128], index: 1, kind: input, shape index: {}]
  %s2 = inlined_call_operand.vmem [shape: f32[8,2], index: 2, kind: input, shape index: {}]
  %s3 = inlined_call_operand.hbm [shape: f32[1,8,128], index: 3, kind: output, shape index: {}]
  %s4 = sld [smem:[#allocation0]]
  $region26: #{tpu_custom_call.1} parent=0
    _
  %s6 = ssub.s32 1, %s4
  %s7 = scalar_select 0, %s6, %s4
  $region1: #{tpu_custom_call.1} parent=0
    #allocation2 [shape = 'u8[4096]{0}', space=vmem, size = 0x1000, scoped, tag = 'input window, operand 1, single buffered']
    #allocation3 [shape = 's32[1]{0}', space=sflag, size = 0x4, scoped, tag = 'scoped memory for tpu_custom_call.1']
    #allocation4 [shape = 's32[1]{0}', space=sflag, size = 0x4, scoped, tag = 'scoped memory for tpu_custom_call.1']
    #allocation5 [shape = 'u8[4096]{0}', space=vmem, size = 0x1000, scoped, tag = 'output window, operand 0, single buffered']
    %8 = vsyncpa [#allocation3], 0
    %9 = vsyncpa [#allocation4], 0
    // Predicated region
    $region2: #{tpu_custom_call.1} parent=1 // pred_check
      _
    $region3: #{tpu_custom_call.1} parent=1 // pred_check_branch
      %11 = sbr.rel (0) target = $region5
    $region4: #{tpu_custom_call.1} parent=1 // pred_region
      _
    $region5: #{tpu_custom_call.1} parent=1 // pred_fallthru
      _
    // Predicated region
    $region6: #{tpu_custom_call.1} parent=1 // pred_check
      _
    $region7: #{tpu_custom_call.1} parent=1 // pred_check_branch
      %13 = sbr.rel (0) target = $region9
    $region8: #{tpu_custom_call.1} parent=1 // pred_region
      %15 = vsyncadd [#allocation3], 0
      %s17 = sshll.u32 %s1, 4
      %s18 = int_to_ptr.hbm [resolvable:$true] %s17
      %s19 = sshll.u32 [#allocation2], 4
      %s20 = int_to_ptr.vmem [resolvable:$true] %s19
      %22 = dma.hbm_to_vmem [thread:$0]  %s18, 128, %s20, [#allocation3]
    $region9: #{tpu_custom_call.1} parent=1 // pred_fallthru
      _
    // Predicated region
    $region10: #{tpu_custom_call.1} parent=1 // pred_check
      _
    $region11: #{tpu_custom_call.1} parent=1 // pred_check_branch
      %24 = sbr.rel (0) target = $region13
    $region12: #{tpu_custom_call.1} parent=1 // pred_region
      _
    $region13: #{tpu_custom_call.1} parent=1 // pred_fallthru
      _
    // Predicated region
    $region14: #{tpu_custom_call.1} parent=1 // pred_check
      _
    $region15: #{tpu_custom_call.1} parent=1 // pred_check_branch
      %26 = sbr.rel (0) target = $region17
    $region16: #{tpu_custom_call.1} parent=1 // pred_region
      %28 = dma.done [#allocation3], 128
    $region17: #{tpu_custom_call.1} parent=1 // pred_fallthru
      _
    %v29 = vld [vmem:[%s0] sm:$0xff]
    %v30 = vld [vmem:[#allocation2] sm:$0xff]
    %v31 = vmul.f32 %v29, %v30
    %32 = vadd.xlane.f32.xlu0 %v31
    %v33 = vpop.xlane.xlu0 %32
    %v34 = vld [vmem:[%s2] sm:$0xff]
    %v35 = vadd.f32 %v33, %v34
    %37 = vrot.lane.b32.xlu0 %v35, 1
    %v38 = vpop.permute.xlu0 %37
    %v40 = vmul.f32 %v34, %v38
    %v41 = vmul.f32 %v40, %v38
    %43 = vrot.lane.b32.xlu0 %v41, 127
    %v44 = vpop.permute.xlu0 %43
    %vm46 = vcmask 7168
    %v47 = vsel %vm46, %v44, 0.0
    %48 = vadd.xlane.f32.xlu0 %v47
    %v49 = vpop.xlane.xlu0 %48
    %v50 = vrot.slane %v49, 4
    %v51 = vadd.f32 %v49, %v50
    %v52 = vrot.slane %v51, 2
    %v53 = vadd.f32 %v51, %v52
    %v54 = vrot.slane %v53, 1
    %v55 = vadd.f32 %v53, %v54
    %s56 = vtos %v55
    %v57 = vstv %s56
    %58 = vst [vmem:[#allocation5] sm:$0xff] %v57
    // Predicated region
    $region18: #{tpu_custom_call.1} parent=1 // pred_check
      _
    $region19: #{tpu_custom_call.1} parent=1 // pred_check_branch
      %60 = sbr.rel (0) target = $region21
    $region20: #{tpu_custom_call.1} parent=1 // pred_region
      %62 = vsyncadd [#allocation4], 0
      %s64 = sshll.u32 [#allocation5], 4
      %s65 = int_to_ptr.vmem [resolvable:$true] %s64
      %s66 = sshll.u32 %s3, 4
      %s67 = int_to_ptr.hbm [resolvable:$true] %s66
      %69 = dma.vmem_to_hbm [thread:$0]  %s65, 128, %s67, [#allocation4]
    $region21: #{tpu_custom_call.1} parent=1 // pred_fallthru
      _
    // Predicated region
    $region22: #{tpu_custom_call.1} parent=1 // pred_check
      _
    $region23: #{tpu_custom_call.1} parent=1 // pred_check_branch
      %71 = sbr.rel (0) target = $region25
    $region24: #{tpu_custom_call.1} parent=1 // pred_region
      %73 = dma.done [#allocation4], 128
    $region25: #{tpu_custom_call.1} parent=1 // pred_fallthru
      _
    %74 = vsyncpa [#allocation3], 1
    %75 = vsyncpa [#allocation4], 1

</llo_original>
